<compile_context>
chip_gen: v6e
topology: v6e:2x2x1
jax: 0.10.0
libtpu: 0.0.40
codegen_flags: <defaults>
</compile_context>

<pallas_src>
import functools

import jax
import jax.numpy as jnp
from jax import lax
from jax.experimental import pallas as pl
from jax.experimental.pallas import tpu as pltpu

EPS = 1e-6  # torch.nn.PairwiseDistance default eps (added to the difference)


def _custom_loss_kernel(feat_ref, pfeat_ref, scores_ref, labels_ref, out_ref,
                        *, batch, eps):
    tb, t, _ = feat_ref.shape

    f = feat_ref[...].astype(jnp.float32)        # (TB, T, D)
    pf = pfeat_ref[...].astype(jnp.float32)      # (TB, T, D)

    # d[b, j] = || f[b, j+1] - pf[b, j] + eps ||_2 ,  j = 0..T-2
    diff = f[:, 1:, :] - pf[:, :-1, :] + eps                      # (TB, T-1, D)
    dist = jnp.sqrt(jnp.sum(diff * diff, axis=-1))                # (TB, T-1)

    dmax = jnp.max(dist, axis=-1, keepdims=True)                  # (TB, 1)
    col = lax.broadcasted_iota(jnp.int32, dist.shape, 1)          # (TB, T-1)
    # first index achieving the max (matches torch.argmax tie-breaking)
    max_idx = jnp.min(jnp.where(dist == dmax, col, t - 1),
                      axis=-1, keepdims=True)                     # (TB, 1)

    scores = scores_ref[...].astype(jnp.float32)                  # (TB, T)
    scol = lax.broadcasted_iota(jnp.int32, scores.shape, 1)
    score_at = jnp.sum(jnp.where(scol == max_idx, scores, 0.0),
                       axis=-1, keepdims=True)                    # (TB, 1)

    labels = labels_ref[...]                                      # (TB, 1) int32
    contrib = jnp.where(labels == 13, dmax + score_at, 1.0 - score_at)

    # zero out rows that fall past the real batch (last, partial block)
    row = lax.broadcasted_iota(jnp.int32, (tb, 1), 0)
    gidx = pl.program_id(0) * tb + row
    out_ref[...] = jnp.where(gidx < batch, contrib, 0.0)


def _choose_block_batch(batch, t, d, itemsize, budget_bytes=8 * 1024 * 1024):
    """Largest TB whose two double-buffered feature blocks fit the budget."""
    per_batch = 2 * 2 * t * d * itemsize      # 2 feature tensors x 2 pipeline buffers
    tb = max(int(budget_bytes // max(per_batch, 1)), 1)
    if tb >= batch:
        return batch
    return max((tb // 8) * 8, 8)              # keep blocks sublane-aligned


def custom_loss(features, predicted_features, labels, predicted_scores,
                *, block_batch=None):
    """features, predicted_features: (B, T, D); labels: (B,); scores: (B, T, 1)."""
    B, T, D = features.shape
    assert predicted_features.shape == (B, T, D)

    scores2d = jnp.reshape(predicted_scores, (B, T))      # lane-dense along T
    labels2d = jnp.reshape(labels.astype(jnp.int32), (B, 1))

    itemsize = jnp.dtype(features.dtype).itemsize
    tb = block_batch or _choose_block_batch(B, T, D, itemsize)
    num_blocks = pl.cdiv(B, tb)

    kernel = functools.partial(_custom_loss_kernel, batch=B, eps=EPS)

    partials = pl.pallas_call(
        kernel,
        out_shape=jax.ShapeDtypeStruct((num_blocks * tb, 1), jnp.float32),
        grid_spec=pltpu.PrefetchScalarGridSpec(
            num_scalar_prefetch=0,
            grid=(num_blocks,),
            in_specs=[
                pl.BlockSpec((tb, T, D), lambda i: (i, 0, 0)),
                pl.BlockSpec((tb, T, D), lambda i: (i, 0, 0)),
                pl.BlockSpec((tb, T), lambda i: (i, 0)),
                pl.BlockSpec((tb, 1), lambda i: (i, 0)),
            ],
            out_specs=pl.BlockSpec((tb, 1), lambda i: (i, 0)),
        ),
        compiler_params=pltpu.CompilerParams(
            dimension_semantics=("parallel",),   # independent per-block partials
            vmem_limit_bytes=32 * 1024 * 1024,
        ),
    )(features, predicted_features, scores2d, labels2d)

    return jnp.sum(partials)


def _custom_loss_ref(features, predicted_features, labels, predicted_scores):
    """Pure-JAX reference mirroring the PyTorch forward."""
    loss = jnp.float32(0.0)
    B = features.shape[0]
    for i in range(B):
        diff = features[i, 1:, :] - predicted_features[i, :-1, :] + EPS
        d = jnp.sqrt(jnp.sum(diff * diff, axis=-1))
        m = jnp.argmax(d)
        score = predicted_scores[i].squeeze()[m]
        loss = loss + jnp.where(labels[i] == 13, d[m] + score, 1.0 - score)
    return loss


if __name__ == "__main__":
    key = jax.random.PRNGKey(0)
    k1, k2, k3 = jax.random.split(key, 3)

    B, T, D = 4, 8, 32
    features = jax.random.normal(k1, (B, T, D), dtype=jnp.float32)
    predicted_features = jax.random.normal(k2, (B, T, D), dtype=jnp.float32)
    predicted_scores = jax.random.uniform(k3, (B, T, 1), dtype=jnp.float32)
    labels = jnp.array([13, 7, 13, 2], dtype=jnp.int32)   # exercise both branches

    out = custom_loss(features, predicted_features, labels, predicted_scores)
    jax.block_until_ready(out)

    ref = _custom_loss_ref(features, predicted_features, labels, predicted_scores)
    assert jnp.allclose(out, ref, rtol=1e-4, atol=1e-4), (out, ref)

    print("KERNEL_OK")
</pallas_src>

<mosaic_0001>
module attributes {stable_mosaic.version = 11 : i64} {
  func.func @_custom_loss_kernel(%arg0: i32, %arg1: memref<4x8x32xf32, #tpu.memory_space<vmem>>, %arg2: memref<4x8x32xf32, #tpu.memory_space<vmem>>, %arg3: memref<4x8xf32, #tpu.memory_space<vmem>>, %arg4: memref<4x1xi32, #tpu.memory_space<vmem>>, %arg5: memref<4x1xf32, #tpu.memory_space<vmem>>) attributes {dimension_semantics = [#tpu.dimension_semantics<parallel>], iteration_bounds = array<i64: 1>, scalar_prefetch = 0 : i64, scratch_operands = 0 : i64, tpu.core_type = #tpu.core_type<tc>, window_params = [{transform_indices = @transform_0, window_bounds = array<i64: 4, 8, 32>}, {transform_indices = @transform_1, window_bounds = array<i64: 4, 8, 32>}, {transform_indices = @transform_2, window_bounds = array<i64: 4, 8>}, {transform_indices = @transform_3, window_bounds = array<i64: 4, 1>}, {transform_indices = @transform_4, window_bounds = array<i64: 4, 1>}]} {
    %c0 = arith.constant 0 : index
    %c0_0 = arith.constant 0 : index
    %c0_1 = arith.constant 0 : index
    %0 = vector.load %arg1[%c0, %c0_0, %c0_1] : memref<4x8x32xf32, #tpu.memory_space<vmem>>, vector<4x8x32xf32>
    %c0_2 = arith.constant 0 : index
    %c0_3 = arith.constant 0 : index
    %c0_4 = arith.constant 0 : index
    %1 = vector.load %arg2[%c0_2, %c0_3, %c0_4] : memref<4x8x32xf32, #tpu.memory_space<vmem>>, vector<4x8x32xf32>
    %2 = vector.extract_strided_slice %0 {offsets = [0, 1, 0], sizes = [4, 7, 32], strides = [1, 1, 1]} : vector<4x8x32xf32> to vector<4x7x32xf32>
    %3 = vector.extract_strided_slice %1 {offsets = [0, 0, 0], sizes = [4, 7, 32], strides = [1, 1, 1]} : vector<4x8x32xf32> to vector<4x7x32xf32>
    %4 = arith.subf %2, %3 : vector<4x7x32xf32>
    %cst = arith.constant 9.99999997E-7 : f32
    %5 = vector.broadcast %cst : f32 to vector<4x7x32xf32>
    %6 = arith.addf %4, %5 : vector<4x7x32xf32>
    %7 = arith.mulf %6, %6 : vector<4x7x32xf32>
    %cst_5 = arith.constant dense<0.000000e+00> : vector<4x7xf32>
    %8 = vector.multi_reduction <add>, %7, %cst_5 [2] : vector<4x7x32xf32> to vector<4x7xf32>
    %9 = math.sqrt %8 : vector<4x7xf32>
    %cst_6 = arith.constant dense<0xFF800000> : vector<4xf32>
    %10 = vector.multi_reduction <maximumf>, %9, %cst_6 [1] : vector<4x7xf32> to vector<4xf32>
    %11 = vector.shape_cast %10 : vector<4xf32> to vector<4x1xf32>
    %12 = tpu.iota {dimensions = array<i32: 1>} : vector<4x7xi32>
    %13 = vector.broadcast %11 : vector<4x1xf32> to vector<4x7xf32>
    %14 = arith.cmpf oeq, %9, %13 : vector<4x7xf32>
    %c7_i32 = arith.constant 7 : i32
    %15 = vector.broadcast %c7_i32 : i32 to vector<4x7xi32>
    %16 = arith.select %14, %12, %15 : vector<4x7xi1>, vector<4x7xi32>
    %cst_7 = arith.constant dense<2147483647> : vector<4xi32>
    %17 = vector.multi_reduction <minsi>, %16, %cst_7 [1] : vector<4x7xi32> to vector<4xi32>
    %18 = vector.shape_cast %17 : vector<4xi32> to vector<4x1xi32>
    %c0_8 = arith.constant 0 : index
    %c0_9 = arith.constant 0 : index
    %19 = vector.load %arg3[%c0_8, %c0_9] : memref<4x8xf32, #tpu.memory_space<vmem>>, vector<4x8xf32>
    %20 = tpu.iota {dimensions = array<i32: 1>} : vector<4x8xi32>
    %21 = vector.broadcast %18 : vector<4x1xi32> to vector<4x8xi32>
    %22 = arith.cmpi eq, %20, %21 : vector<4x8xi32>
    %cst_10 = arith.constant 0.000000e+00 : f32
    %23 = vector.broadcast %cst_10 : f32 to vector<4x8xf32>
    %24 = arith.select %22, %19, %23 : vector<4x8xi1>, vector<4x8xf32>
    %cst_11 = arith.constant dense<0.000000e+00> : vector<4xf32>
    %25 = vector.multi_reduction <add>, %24, %cst_11 [1] : vector<4x8xf32> to vector<4xf32>
    %26 = vector.shape_cast %25 : vector<4xf32> to vector<4x1xf32>
    %c0_12 = arith.constant 0 : index
    %c0_13 = arith.constant 0 : index
    %27 = vector.load %arg4[%c0_12, %c0_13] : memref<4x1xi32, #tpu.memory_space<vmem>>, vector<4x1xi32>
    %c13_i32 = arith.constant 13 : i32
    %28 = vector.broadcast %c13_i32 : i32 to vector<4x1xi32>
    %29 = arith.cmpi eq, %27, %28 : vector<4x1xi32>
    %30 = arith.addf %11, %26 : vector<4x1xf32>
    %cst_14 = arith.constant 1.000000e+00 : f32
    %31 = vector.broadcast %cst_14 : f32 to vector<4x1xf32>
    %32 = arith.subf %31, %26 : vector<4x1xf32>
    %33 = arith.select %29, %30, %32 : vector<4x1xi1>, vector<4x1xf32>
    %34 = tpu.iota {dimensions = array<i32: 0>} : vector<4x1xi32>
    %c4_i32 = arith.constant 4 : i32
    %35 = arith.muli %arg0, %c4_i32 : i32
    %36 = vector.broadcast %35 : i32 to vector<4x1xi32>
    %37 = arith.addi %36, %34 : vector<4x1xi32>
    %c4_i32_15 = arith.constant 4 : i32
    %38 = vector.broadcast %c4_i32_15 : i32 to vector<4x1xi32>
    %39 = arith.cmpi slt, %37, %38 : vector<4x1xi32>
    %cst_16 = arith.constant 0.000000e+00 : f32
    %40 = vector.broadcast %cst_16 : f32 to vector<4x1xf32>
    %41 = arith.select %39, %33, %40 : vector<4x1xi1>, vector<4x1xf32>
    %c0_17 = arith.constant 0 : index
    %c0_18 = arith.constant 0 : index
    %42 = vector.load %arg5[%c0_17, %c0_18] : memref<4x1xf32, #tpu.memory_space<vmem>>, vector<4x1xf32>
    tpu.vector_store %arg5[%c0_17, %c0_18], %41 {strides = array<i32>} : memref<4x1xf32, #tpu.memory_space<vmem>>, vector<4x1xf32>,
    return
  }
  func.func @transform_0(%arg0: i32) -> (i32, i32, i32) {
    %c0_i32 = arith.constant 0 : i32
    %c0_i32_0 = arith.constant 0 : i32
    %c0_i32_1 = arith.constant 0 : i32
    return %arg0, %c0_i32, %c0_i32_0 : i32, i32, i32
  }
  func.func @transform_1(%arg0: i32) -> (i32, i32, i32) {
    %c0_i32 = arith.constant 0 : i32
    %c0_i32_0 = arith.constant 0 : i32
    %c0_i32_1 = arith.constant 0 : i32
    return %arg0, %c0_i32, %c0_i32_0 : i32, i32, i32
  }
  func.func @transform_2(%arg0: i32) -> (i32, i32) {
    %c0_i32 = arith.constant 0 : i32
    %c0_i32_0 = arith.constant 0 : i32
    return %arg0, %c0_i32 : i32, i32
  }
  func.func @transform_3(%arg0: i32) -> (i32, i32) {
    %c0_i32 = arith.constant 0 : i32
    %c0_i32_0 = arith.constant 0 : i32
    return %arg0, %c0_i32 : i32, i32
  }
  func.func @transform_4(%arg0: i32) -> (i32, i32) {
    %c0_i32 = arith.constant 0 : i32
    %c0_i32_0 = arith.constant 0 : i32
    return %arg0, %c0_i32 : i32, i32
  }
}

</mosaic_0001>

<llo_original>
// kernel: tpu_custom_call.1
$region0: #{tpu_custom_call.1}
  #allocation0 [shape = 'u32[]', space=smem, size = 0x4, offset = 0x4, fixed_abs, tag = 'smem constant byte address 0x4 - core index']
  #allocation1 [shape = 'u32[144,128]{1,0:T(1,128)}', space=vmem, size = 0x12000, scoped, tag = 'internal scratch']
  %s0 = inlined_call_operand.hbm [shape: f32[4,8,32], index: 0, kind: input, shape index: {}]
  %s1 = inlined_call_operand.hbm [shape: f32[4,8,32], index: 1, kind: input, shape index: {}]
  %s2 = inlined_call_operand.vmem [shape: f32[4,8], index: 2, kind: input, shape index: {}]
  %s3 = inlined_call_operand.vmem [shape: s32[4,1], index: 3, kind: input, shape index: {}]
  %s4 = inlined_call_operand.vmem [shape: f32[4,1], index: 4, kind: output, shape index: {}]
  %s5 = sld [smem:[#allocation0]]
  $region34: #{tpu_custom_call.1} parent=0
    _
  %s7 = ssub.s32 1, %s5
  %s8 = scalar_select 0, %s7, %s5
  $region1: #{tpu_custom_call.1} parent=0
    #allocation2 [shape = 'u8[16384]{0}', space=vmem, size = 0x4000, scoped, tag = 'input window, operand 0, single buffered']
    #allocation3 [shape = 's32[1]{0}', space=sflag, size = 0x4, scoped, tag = 'scoped memory for tpu_custom_call.1']
    #allocation4 [shape = 'u8[16384]{0}', space=vmem, size = 0x4000, scoped, tag = 'input window, operand 1, single buffered']
    #allocation5 [shape = 's32[1]{0}', space=sflag, size = 0x4, scoped, tag = 'scoped memory for tpu_custom_call.1']
    %9 = vsyncpa [#allocation3], 0
    %10 = vsyncpa [#allocation5], 0
    // Predicated region
    $region2: #{tpu_custom_call.1} parent=1 // pred_check
      _
    $region3: #{tpu_custom_call.1} parent=1 // pred_check_branch
      %12 = sbr.rel (0) target = $region5
    $region4: #{tpu_custom_call.1} parent=1 // pred_region
      %s14 = ssub.s32 512, 512
      %15 = vsyncadd [#allocation3], %s14
      %s16 = sshll.u32 [#allocation2], 4
      %s17 = int_to_ptr.vmem [resolvable:$true] %s16
      %22 = dma.hbm_to_vmem [thread:$0]  %s0, 512, %s17, [#allocation3], 128, 128, 8
    $region5: #{tpu_custom_call.1} parent=1 // pred_fallthru
      _
    // Predicated region
    $region6: #{tpu_custom_call.1} parent=1 // pred_check
      _
    $region7: #{tpu_custom_call.1} parent=1 // pred_check_branch
      %24 = sbr.rel (0) target = $region9
    $region8: #{tpu_custom_call.1} parent=1 // pred_region
      %s26 = ssub.s32 512, 512
      %27 = vsyncadd [#allocation5], %s26
      %s28 = sshll.u32 [#allocation4], 4
      %s29 = int_to_ptr.vmem [resolvable:$true] %s28
      %34 = dma.hbm_to_vmem [thread:$0]  %s1, 512, %s29, [#allocation5], 128, 128, 8
    $region9: #{tpu_custom_call.1} parent=1 // pred_fallthru
      _
    // Predicated region
    $region10: #{tpu_custom_call.1} parent=1 // pred_check
      _
    $region11: #{tpu_custom_call.1} parent=1 // pred_check_branch
      %36 = sbr.rel (0) target = $region13
    $region12: #{tpu_custom_call.1} parent=1 // pred_region
      _
    $region13: #{tpu_custom_call.1} parent=1 // pred_fallthru
      _
    // Predicated region
    $region14: #{tpu_custom_call.1} parent=1 // pred_check
      _
    $region15: #{tpu_custom_call.1} parent=1 // pred_check_branch
      %38 = sbr.rel (0) target = $region17
    $region16: #{tpu_custom_call.1} parent=1 // pred_region
      _
    $region17: #{tpu_custom_call.1} parent=1 // pred_fallthru
      _
    // Predicated region
    $region18: #{tpu_custom_call.1} parent=1 // pred_check
      _
    $region19: #{tpu_custom_call.1} parent=1 // pred_check_branch
      %40 = sbr.rel (0) target = $region21
    $region20: #{tpu_custom_call.1} parent=1 // pred_region
      %41 = dma.done [#allocation3], 512
    $region21: #{tpu_custom_call.1} parent=1 // pred_fallthru
      _
    // Predicated region
    $region22: #{tpu_custom_call.1} parent=1 // pred_check
      _
    $region23: #{tpu_custom_call.1} parent=1 // pred_check_branch
      %43 = sbr.rel (0) target = $region25
    $region24: #{tpu_custom_call.1} parent=1 // pred_region
      %44 = dma.done [#allocation5], 512
    $region25: #{tpu_custom_call.1} parent=1 // pred_fallthru
      _
    %v45 = vld [vmem:[#allocation2] sm:$0xff]
    %v46 = vld [vmem:[#allocation2 + $0x8] sm:$0xff]
    %v47 = vld [vmem:[#allocation2 + $0x10] sm:$0xff]
    %v48 = vld [vmem:[#allocation2 + $0x18] sm:$0xff]
    %v49 = vld [vmem:[#allocation4] sm:$0xff]
    %v50 = vld [vmem:[#allocation4 + $0x8] sm:$0xff]
    %v51 = vld [vmem:[#allocation4 + $0x10] sm:$0xff]
    %v52 = vld [vmem:[#allocation4 + $0x18] sm:$0xff]
    %v57 = vrot.slane %v49, 7
    %v58 = vrot.slane %v50, 7
    %v59 = vrot.slane %v51, 7
    %v60 = vrot.slane %v52, 7
    %v65 = vsub.f32 %v45, %v57
    %v66 = vsub.f32 %v46, %v58
    %v67 = vsub.f32 %v47, %v59
    %v68 = vsub.f32 %v48, %v60
    %v69 = vadd.f32 %v65, 1e-06
    %v70 = vadd.f32 %v66, 1e-06
    %v71 = vadd.f32 %v67, 1e-06
    %v72 = vadd.f32 %v68, 1e-06
    %v73 = vmul.f32 %v69, %v69
    %v74 = vmul.f32 %v70, %v70
    %v75 = vmul.f32 %v71, %v71
    %v76 = vmul.f32 %v72, %v72
    %vm77 = vcmask 261121
    %v78 = vsel %vm77, %v73, 0.0
    %79 = vadd.xlane.f32.xlu0 %v78
    %v80 = vpop.xlane.xlu0 %79
    %v81 = vsel %vm77, %v74, 0.0
    %82 = vadd.xlane.f32.xlu0 %v81
    %v83 = vpop.xlane.xlu0 %82
    %v84 = vsel %vm77, %v75, 0.0
    %85 = vadd.xlane.f32.xlu0 %v84
    %v86 = vpop.xlane.xlu0 %85
    %v87 = vsel %vm77, %v76, 0.0
    %88 = vadd.xlane.f32.xlu0 %v87
    %v89 = vpop.xlane.xlu0 %88
    %v90 = vrsqrt.pop %v80
    %v91 = vmul.f32 %v80, %v90
    %vm92 = vcmp.eq.f32.partialorder %v80, inf
    %v93 = vsel %vm92, %v80, %v91
    %vm94 = vcmp.eq.f32.partialorder %v80, 0.0
    %v95 = vand.u32 %v80, 2147483648
    %v96 = vsel %vm94, %v95, %v93
    %v97 = vrsqrt.pop %v83
    %v98 = vmul.f32 %v83, %v97
    %vm99 = vcmp.eq.f32.partialorder %v83, inf
    %v100 = vsel %vm99, %v83, %v98
    %vm101 = vcmp.eq.f32.partialorder %v83, 0.0
    %v102 = vand.u32 %v83, 2147483648
    %v103 = vsel %vm101, %v102, %v100
    %v104 = vrsqrt.pop %v86
    %v105 = vmul.f32 %v86, %v104
    %vm106 = vcmp.eq.f32.partialorder %v86, inf
    %v107 = vsel %vm106, %v86, %v105
    %vm108 = vcmp.eq.f32.partialorder %v86, 0.0
    %v109 = vand.u32 %v86, 2147483648
    %v110 = vsel %vm108, %v109, %v107
    %v111 = vrsqrt.pop %v89
    %v112 = vmul.f32 %v89, %v111
    %vm113 = vcmp.eq.f32.partialorder %v89, inf
    %v114 = vsel %vm113, %v89, %v112
    %vm115 = vcmp.eq.f32.partialorder %v89, 0.0
    %v116 = vand.u32 %v89, 2147483648
    %v117 = vsel %vm115, %v116, %v114
    %v122 = vlaneseq
    %v123 = vand.u32 %v122, 127
    %v124 = vlaneseq
    %v125 = vshrl.u32 %v124, 7
    %v126 = vsub.s32 %v123, %v125
    %v127 = vrot.slane %v96, %v126
    %v128 = vlaneseq
    %v129 = vshrl.u32 %v128, 7
    %v130 = vsub.s32 %v123, %v129
    %v131 = vrot.slane %v103, %v130
    %v132 = vlaneseq
    %v133 = vshrl.u32 %v132, 7
    %v134 = vsub.s32 %v123, %v133
    %v135 = vrot.slane %v110, %v134
    %v136 = vlaneseq
    %v137 = vshrl.u32 %v136, 7
    %v138 = vsub.s32 %v123, %v137
    %v139 = vrot.slane %v117, %v138
    %vm140 = vcmask 1041409
    %v141 = vsel %vm140, %v131, %v127
    %vm142 = vcmask 1042434
    %v143 = vsel %vm142, %v135, %v141
    %vm144 = vcmask 1043459
    %v145 = vsel %vm144, %v139, %v143
    %vm147 = vcmask 60424
    %v148 = vsel %vm147, %v145, -inf
    %149 = vmax.xlane.f32.xlu0 %v148
    %v150 = vpop.xlane.xlu0 %149
    %v152 = vlaneseq
    %v153 = vshrl.u32 %v152, 7
    %v154 = vsub.s32 0, %v153
    %v155 = vrot.slane %v150, %v154
    %v156 = vlaneseq
    %v157 = vshrl.u32 %v156, 7
    %v158 = vsub.s32 1, %v157
    %v159 = vrot.slane %v150, %v158
    %v160 = vlaneseq
    %v161 = vshrl.u32 %v160, 7
    %v162 = vsub.s32 2, %v161
    %v163 = vrot.slane %v150, %v162
    %v164 = vlaneseq
    %v165 = vshrl.u32 %v164, 7
    %v166 = vsub.s32 3, %v165
    %v167 = vrot.slane %v150, %v166
    %vm172 = vcmp.eq.f32.partialorder %v96, %v155
    %vm173 = vcmp.eq.f32.partialorder %v103, %v159
    %vm174 = vcmp.eq.f32.partialorder %v110, %v163
    %vm175 = vcmp.eq.f32.partialorder %v117, %v167
    %s177 = sor.u32 256, 255
    %178 = vbcast.lane.b32.xlu0 %v123, %s177
    %v179 = vpop.permute.xlu0 %178
    %v180 = vsel %vm172, %v179, 7
    %v181 = vsel %vm173, %v179, 7
    %v182 = vsel %vm174, %v179, 7
    %v183 = vsel %vm175, %v179, 7
    %184 = vset.pattern.permute.xlu0 0
    %185 = vperm.xlu0 %184, %v180
    %v186 = vpop.permute.xlu0 %185
    %187 = vset.pattern.permute.xlu0 0
    %188 = vperm.xlu0 %187, %v181
    %v189 = vpop.permute.xlu0 %188
    %190 = vset.pattern.permute.xlu0 0
    %191 = vperm.xlu0 %190, %v182
    %v192 = vpop.permute.xlu0 %191
    %193 = vset.pattern.permute.xlu0 0
    %194 = vperm.xlu0 %193, %v183
    %v195 = vpop.permute.xlu0 %194
    %v196 = vlaneseq
    %v197 = vshrl.u32 %v196, 7
    %v198 = vsub.s32 %v123, %v197
    %v199 = vrot.slane %v186, %v198
    %v200 = vlaneseq
    %v201 = vshrl.u32 %v200, 7
    %v202 = vsub.s32 %v123, %v201
    %v203 = vrot.slane %v189, %v202
    %v204 = vlaneseq
    %v205 = vshrl.u32 %v204, 7
    %v206 = vsub.s32 %v123, %v205
    %v207 = vrot.slane %v192, %v206
    %v208 = vlaneseq
    %v209 = vshrl.u32 %v208, 7
    %v210 = vsub.s32 %v123, %v209
    %v211 = vrot.slane %v195, %v210
    %v212 = vsel %vm140, %v203, %v199
    %v213 = vsel %vm142, %v207, %v212
    %v214 = vsel %vm144, %v211, %v213
    %v215 = vsel %vm147, %v214, 2147483647
    %v216 = vand.u32 %v215, 65535
    %v217 = vshra.s32 %v215, 16
    %v218 = vcvt.s32.f32 %v216
    %v219 = vcvt.s32.f32 %v217
    %220 = vmin.xlane.f32.xlu0 %v219
    %v221 = vpop.xlane.xlu0 %220
    %vm222 = vcmp.eq.f32.partialorder %v219, %v221
    %v223 = vsel %vm222, %v218, inf
    %224 = vmin.xlane.f32.xlu0 %v223
    %v225 = vpop.xlane.xlu0 %224
    %v226 = vcvt.f32.s32 %v225
    %v227 = vcvt.f32.s32 %v221
    %v228 = vshll.u32 %v227, 16
    %v229 = vadd.s32 %v228, %v226
    %v230 = vld [vmem:[%s2] sm:$0xf]
    %vm231 = vcmp.eq.s32.totalorder %v123, %v229
    %v232 = vsel %vm231, %v230, 0.0
    %vm233 = vcmask 60416
    %v234 = vsel %vm233, %v232, 0.0
    %235 = vadd.xlane.f32.xlu0 %v234
    %v236 = vpop.xlane.xlu0 %235
    %v237 = vld [vmem:[%s3] sm:$0xf]
    %vm238 = vcmp.eq.s32.totalorder %v237, 13
    %v239 = vadd.f32 %v150, %v236
    %v240 = vsub.f32 1.0, %v236
    %v241 = vsel %vm238, %v239, %v240
    %v242 = vlaneseq
    %v243 = vshrl.u32 %v242, 7
    %s244 = smul.u32 0, 4
    %v245 = vstv %s244
    %v246 = vadd.s32 %v245, %v243
    %vm247 = vcmp.lt.s32.totalorder %v246, 4
    %v248 = vsel %vm247, %v241, 0.0
    %vm249 = vcmask 3072
    %250 = vst.msk [vmem:[%s4] sm:$0xf] %vm249, %v248
    // Predicated region
    $region26: #{tpu_custom_call.1} parent=1 // pred_check
      _
    $region27: #{tpu_custom_call.1} parent=1 // pred_check_branch
      %252 = sbr.rel (0) target = $region29
    $region28: #{tpu_custom_call.1} parent=1 // pred_region
      _
    $region29: #{tpu_custom_call.1} parent=1 // pred_fallthru
      _
    // Predicated region
    $region30: #{tpu_custom_call.1} parent=1 // pred_check
      _
    $region31: #{tpu_custom_call.1} parent=1 // pred_check_branch
      %254 = sbr.rel (0) target = $region33
    $region32: #{tpu_custom_call.1} parent=1 // pred_region
      _
    $region33: #{tpu_custom_call.1} parent=1 // pred_fallthru
      _
    %255 = vsyncpa [#allocation3], 1
    %256 = vsyncpa [#allocation5], 1

</llo_original>
